<compile_context>
chip_gen: v7x
topology: tpu7x:2x2x1
jax: 0.10.0
libtpu: 0.0.40
codegen_flags: <defaults>
</compile_context>

<pallas_src>
from dataclasses import dataclass

import jax
import jax.numpy as jnp
from jax.experimental import pallas as pl
from jax.experimental.pallas import tpu as pltpu


@dataclass
class ModulationOut:
    shift: jax.Array
    scale: jax.Array
    gate: jax.Array


# --------------------------------------------------------------------------------------
# Kernel
# --------------------------------------------------------------------------------------
def _modulation_kernel(x_ref, w_ref, scale_ref, b_ref, o_ref):
    # x_ref     : [rows, dim]   resident (block index constant across the grid)
    # w_ref     : [dim, tn]     streamed, contiguous in HBM, double-buffered
    # scale_ref : [1, tn] f32   per-output-channel dequant scale (ones for bf16/f32 W)
    # b_ref     : [1, tn] f32   bias
    # o_ref     : [rows, tn]
    x = x_ref[...].astype(jnp.float32)
    s = x * jax.nn.sigmoid(x)                         # SiLU in f32 on the EUP (tiny)

    w = w_ref[...]
    if w.dtype == jnp.int8:
        # Widen int8 -> f32 -> bf16 (guaranteed lowering path); dequant scale is applied
        # in the f32 epilogue below, so the MXU sees plain bf16 operands.
        w = w.astype(jnp.float32).astype(jnp.bfloat16)
    s = s.astype(w.dtype)

    y = jnp.dot(s, w, preferred_element_type=jnp.float32)   # MXU, f32 accumulation
    y = y * scale_ref[...] + b_ref[...]                      # f32 epilogue
    o_ref[...] = y.astype(o_ref.dtype)


# --------------------------------------------------------------------------------------
# Generation-aware tile sizing
# --------------------------------------------------------------------------------------
def _vmem_capacity_bytes() -> int:
    try:
        info = pltpu.get_tpu_info()
        cap = getattr(info, "vmem_capacity_bytes", None)
        if cap:
            return int(cap)
    except Exception:
        pass
    return 64 * 1024 * 1024  # conservative fallback (v7x per-TC)


def _vmem_target_bytes() -> int:
    cap = _vmem_capacity_bytes()
    # ~48 MiB on v7x (64 MiB/TC), up to 96 MiB on v5e/v6e (128 MiB/TC).
    return min(3 * cap // 4, 96 * 1024 * 1024)


def _pick_tn(dim: int, mult: int, w_itemsize: int, vmem_budget: int) -> int:
    """Largest 128-aligned divisor of dim whose double-buffered W tile fits the budget.
    Prefers tn = dim (single contiguous DMA per chunk)."""
    slack = 4 * 1024 * 1024  # x / out / bias / scale double-buffers + internal scratch

    def fits(tn):
        return 2 * dim * tn * w_itemsize + slack <= vmem_budget

    if dim % 128 != 0:
        # Irregular dims: keep full width (assumed small; the caller raises the vmem
        # limit to cover the chosen tile, clamped to physical capacity).
        return dim

    cands = [c for c in range(dim, 127, -128) if dim % c == 0]
    tn = next((c for c in cands if fits(c)), 128)

    # Keep the total grid step count even so v7x's 2 TCs get balanced shards.
    if (mult * (dim // tn)) % 2 == 1 and tn % 256 == 0:
        tn //= 2
    return tn


# --------------------------------------------------------------------------------------
# Parameter preparation (done once, offline)
# --------------------------------------------------------------------------------------
def prepare_modulation_params(w_pt, b_pt, *, dim, mult, dtype=jnp.bfloat16,
                              tn=None, quantize_int8=False):
    """Convert PyTorch-layout Linear params to the kernel layout.

    w_pt : [mult*dim, dim]  (nn.Linear weight, (out, in))
    b_pt : [mult*dim]
    Returns (w4, scale, bias, tn):
      w4    : [mult, n_sub, dim, tn]   chunk-major; each streamed tile contiguous in HBM
      scale : [mult, 1, dim] f32       per-output-channel dequant scale (ones unless int8)
      bias  : [mult, 1, dim] f32
    """
    # y = x @ W.T + b  ->  chunk c uses W[c*dim:(c+1)*dim, :].T  => [in, out] layout.
    w = jnp.transpose(w_pt.reshape(mult, dim, dim), (0, 2, 1)).astype(jnp.float32)

    if quantize_int8:
        amax = jnp.max(jnp.abs(w), axis=1, keepdims=True)            # [mult, 1, dim]
        scale = (jnp.maximum(amax, 1e-12) / 127.0).astype(jnp.float32)
        w_store = jnp.clip(jnp.round(w / scale), -127, 127).astype(jnp.int8)
    else:
        w_store = w.astype(dtype)
        scale = jnp.ones((mult, 1, dim), jnp.float32)

    if tn is None:
        tn = _pick_tn(dim, mult, w_store.dtype.itemsize, _vmem_target_bytes())
    assert dim % tn == 0 and (tn % 128 == 0 or tn == dim)
    n_sub = dim // tn

    # [mult, in, out] -> [mult, n_sub, in, tn]  (materialized once => contiguous tiles)
    w4 = w_store.reshape(mult, dim, n_sub, tn).transpose(0, 2, 1, 3)
    bias = b_pt.reshape(mult, 1, dim).astype(jnp.float32)
    return w4, scale, bias, tn


# --------------------------------------------------------------------------------------
# pallas_call wrapper
# --------------------------------------------------------------------------------------
def modulation_matmul(x, w4, scale, bias, *, out_dtype=None):
    """Computes silu(x) @ W * scale + bias with W in chunk/sub-tile-major layout.

    x     : [rows, dim]
    w4    : [mult, n_sub, dim, tn]
    scale : [mult, 1, dim] f32
    bias  : [mult, 1, dim] f32
    Returns [mult, rows, dim]  (each modulation chunk is a contiguous block).
    """
    rows, dim = x.shape
    mult, n_sub, dim_w, tn = w4.shape
    assert dim_w == dim and n_sub * tn == dim
    assert scale.shape == (mult, 1, dim) and bias.shape == (mult, 1, dim)
    out_dtype = out_dtype if out_dtype is not None else x.dtype

    # Pad rows to the bf16 sublane-packing factor (16) — removes half-packed vregs and
    # masked sublane stores; padded rows only see bias and are sliced off below.
    rows_pad = max(16, ((rows + 15) // 16) * 16)
    if rows_pad != rows:
        x = jnp.pad(x, ((0, rows_pad - rows), (0, 0)))

    x_isize = x.dtype.itemsize
    o_isize = jnp.dtype(out_dtype).itemsize
    w_isize = w4.dtype.itemsize

    # VMEM limit: generation-aware target, but always at least what the chosen tile
    # needs (clamped to physical capacity).
    cap = _vmem_capacity_bytes()
    required = (2 * dim * tn * w_isize + 2 * rows_pad * tn * o_isize
                + 2 * rows_pad * dim * x_isize + (2 << 20))
    vmem_limit = int(min(max(_vmem_target_bytes(), required), cap))

    cost = pl.CostEstimate(
        flops=2 * rows_pad * dim * mult * dim,
        transcendentals=mult * n_sub * rows_pad * dim,
        bytes_accessed=(w4.size * w_isize + x.size * x_isize
                        + mult * rows_pad * dim * o_isize
                        + scale.size * 4 + bias.size * 4),
    )

    out = pl.pallas_call(
        _modulation_kernel,
        out_shape=jax.ShapeDtypeStruct((mult, rows_pad, dim), out_dtype),
        grid=(mult, n_sub),
        in_specs=[
            # x stays resident in VMEM (same block index every step).
            pl.BlockSpec((rows_pad, dim), lambda m, j: (0, 0)),
            # W tile for chunk m, sub-tile j — contiguous in HBM, double-buffered.
            pl.BlockSpec((pl.Squeezed(), pl.Squeezed(), dim, tn),
                         lambda m, j: (m, j, 0, 0)),
            # Matching dequant-scale and bias tiles.
            pl.BlockSpec((pl.Squeezed(), 1, tn), lambda m, j: (m, 0, j)),
            pl.BlockSpec((pl.Squeezed(), 1, tn), lambda m, j: (m, 0, j)),
        ],
        out_specs=pl.BlockSpec((pl.Squeezed(), rows_pad, tn), lambda m, j: (m, 0, j)),
        compiler_params=pltpu.CompilerParams(
            # No cross-step dependency (silu recomputed per step) => both axes parallel.
            dimension_semantics=("parallel", "parallel"),
            vmem_limit_bytes=vmem_limit,
        ),
        cost_estimate=cost,
    )(x, w4, scale, bias)

    if rows_pad != rows:
        out = out[:, :rows, :]
    return out


# --------------------------------------------------------------------------------------
# Module
# --------------------------------------------------------------------------------------
class Modulation:
    """JAX/Pallas port of flux Modulation.

    Parameters are converted once at init to the kernel layout:
      w4    : [mult, n_sub, dim, tn]  (bf16 by default, int8 behind `quantize_int8`)
      scale : [mult, 1, dim] f32
      bias  : [mult, 1, dim] f32
    """

    def __init__(self, dim: int, double: bool, key: jax.Array,
                 dtype=jnp.bfloat16, quantize_int8: bool = False):
        self.is_double = double
        self.multiplier = 6 if double else 3
        self.dim = dim
        kw, kb = jax.random.split(key)
        bound = 1.0 / (dim ** 0.5)
        # PyTorch nn.Linear shapes: weight (mult*dim, dim), bias (mult*dim,)
        w_pt = jax.random.uniform(kw, (self.multiplier * dim, dim),
                                  minval=-bound, maxval=bound, dtype=jnp.float32)
        b_pt = jax.random.uniform(kb, (self.multiplier * dim,),
                                  minval=-bound, maxval=bound, dtype=jnp.float32)
        self.w4, self.scale, self.bias, self.tn = prepare_modulation_params(
            w_pt, b_pt, dim=dim, mult=self.multiplier, dtype=dtype,
            quantize_int8=quantize_int8)

    def __call__(self, vec: jax.Array):
        if vec.ndim == 2:
            vec = vec[:, None, :]                                   # (B, 1, dim)
        B, S, D = vec.shape
        assert D == self.dim
        flat = vec.reshape(B * S, D)
        out = modulation_matmul(flat, self.w4, self.scale, self.bias,
                                out_dtype=vec.dtype)                # (mult, B*S, D)
        out = out.reshape(self.multiplier, B, S, D)
        first = ModulationOut(out[0], out[1], out[2])
        second = ModulationOut(out[3], out[4], out[5]) if self.is_double else None
        return first, second


# --------------------------------------------------------------------------------------
# Pure-JAX reference (matches the kernel's dtype discipline)
# --------------------------------------------------------------------------------------
def _reference(vec, w4, scale, bias):
    if vec.ndim == 2:
        vec = vec[:, None, :]
    mult, n_sub, dim, tn = w4.shape
    # Reconstruct [mult, in, out] and fold the per-output-channel scale.
    w = jnp.transpose(w4, (0, 2, 1, 3)).reshape(mult, dim, dim).astype(jnp.float32)
    w = w * scale                                                   # broadcast over 'in'
    x = vec.astype(jnp.float32)
    s = x * jax.nn.sigmoid(x)
    if w4.dtype in (jnp.bfloat16, jnp.int8):
        s = s.astype(jnp.bfloat16).astype(jnp.float32)              # kernel's bf16 LHS cast
    y = jnp.einsum("bsd,mdo->mbso", s, w)
    return y + bias.astype(jnp.float32)[:, None, :, :]


if __name__ == "__main__":
    key = jax.random.PRNGKey(0)
    k_vec, k_mod, k_vec2, k_mod2, k_par2 = jax.random.split(key, 5)

    # Case 1: double=True, tiny dim (single full-width tile per chunk), rows padded 2 -> 16.
    B, dim = 2, 32
    vec = jax.random.normal(k_vec, (B, dim), dtype=jnp.float32)
    mod = Modulation(dim=dim, double=True, key=k_mod, dtype=jnp.bfloat16)
    m1, m2 = mod(vec)
    outs = [m1.shift, m1.scale, m1.gate, m2.shift, m2.scale, m2.gate]
    for o in outs:
        jax.block_until_ready(o)
    got = jnp.stack(outs, axis=0).astype(jnp.float32)               # (6, B, 1, dim)
    ref = _reference(vec, mod.w4, mod.scale, mod.bias)
    assert got.shape == (6, B, 1, dim), got.shape
    assert jnp.allclose(got, ref, atol=1e-2, rtol=1e-2), "case1 mismatch vs reference"

    # Case 2: double=False, dim=384 with forced tn=128 — exercises the contiguous
    # streamed W sub-tiles ([mult, n_sub, dim, tn] layout) and the all-parallel grid.
    B2, dim2 = 2, 384
    vec2 = jax.random.normal(k_vec2, (B2, dim2), dtype=jnp.float32)
    bound2 = 1.0 / (dim2 ** 0.5)
    kw2, kb2 = jax.random.split(k_par2)
    w_pt2 = jax.random.uniform(kw2, (3 * dim2, dim2), minval=-bound2, maxval=bound2,
                               dtype=jnp.float32)
    b_pt2 = jax.random.uniform(kb2, (3 * dim2,), minval=-bound2, maxval=bound2,
                               dtype=jnp.float32)
    w4_2, sc_2, b_2, _ = prepare_modulation_params(
        w_pt2, b_pt2, dim=dim2, mult=3, dtype=jnp.bfloat16, tn=128)
    out2 = modulation_matmul(vec2, w4_2, sc_2, b_2, out_dtype=vec2.dtype)
    jax.block_until_ready(out2)
    got2 = out2.reshape(3, B2, 1, dim2).astype(jnp.float32)
    ref2 = _reference(vec2, w4_2, sc_2, b_2)
    assert jnp.allclose(got2, ref2, atol=1e-2, rtol=1e-2), "case2 mismatch vs reference"

    # Case 3: int8-quantized weights (flag) — halves the HBM weight stream; dequant scale
    # folded into the f32 epilogue.  Compared against the dequantized-weight reference.
    mod3 = Modulation(dim=dim2, double=False, key=k_mod2, quantize_int8=True)
    m3, none3 = mod3(vec2)
    assert none3 is None
    got3 = jnp.stack([m3.shift, m3.scale, m3.gate], axis=0).astype(jnp.float32)
    jax.block_until_ready(got3)
    ref3 = _reference(vec2, mod3.w4, mod3.scale, mod3.bias)
    assert jnp.allclose(got3, ref3, atol=1e-2, rtol=1e-2), "case3 (int8) mismatch vs reference"

    # Module-path sanity for the default single (double=False) bf16 case.
    mod4 = Modulation(dim=dim2, double=False, key=k_mod2, dtype=jnp.bfloat16)
    s1, s2 = mod4(vec2)
    assert s2 is None
    jax.block_until_ready(s1.gate)
    got4 = jnp.stack([s1.shift, s1.scale, s1.gate], axis=0).astype(jnp.float32)
    ref4 = _reference(vec2, mod4.w4, mod4.scale, mod4.bias)
    assert jnp.allclose(got4, ref4, atol=1e-2, rtol=1e-2), "case4 mismatch vs reference"

    print("KERNEL_OK")
</pallas_src>

<mosaic_0001>
module attributes {stable_mosaic.version = 11 : i64} {
  func.func @_modulation_kernel(%arg0: i32, %arg1: i32, %arg2: memref<16x32xf32, #tpu.memory_space<vmem>>, %arg3: memref<1x1x32x32xbf16, #tpu.memory_space<vmem>>, %arg4: memref<1x1x32xf32, #tpu.memory_space<vmem>>, %arg5: memref<1x1x32xf32, #tpu.memory_space<vmem>>, %arg6: memref<1x16x32xf32, #tpu.memory_space<vmem>>) attributes {dimension_semantics = [#tpu.dimension_semantics<parallel>, #tpu.dimension_semantics<parallel>], iteration_bounds = array<i64: 6, 1>, scalar_prefetch = 0 : i64, scratch_operands = 0 : i64, tpu.core_type = #tpu.core_type<tc>, window_params = [{pipeline_mode = #tpu.pipeline_mode<synchronous>, transform_indices = @transform_0, window_bounds = array<i64: 16, 32>}, {transform_indices = @transform_1, window_bounds = array<i64: 1, 1, 32, 32>}, {transform_indices = @transform_2, window_bounds = array<i64: 1, 1, 32>}, {transform_indices = @transform_3, window_bounds = array<i64: 1, 1, 32>}, {transform_indices = @transform_4, window_bounds = array<i64: 1, 16, 32>}]} {
    %c0 = arith.constant 0 : index
    %c0_0 = arith.constant 0 : index
    %0 = vector.load %arg2[%c0, %c0_0] : memref<16x32xf32, #tpu.memory_space<vmem>>, vector<16x32xf32>
    %1 = arith.negf %0 : vector<16x32xf32>
    %2 = math.exp %1 : vector<16x32xf32>
    %cst = arith.constant 1.000000e+00 : f32
    %3 = vector.broadcast %cst : f32 to vector<16x32xf32>
    %4 = arith.addf %3, %2 : vector<16x32xf32>
    %5 = arith.divf %3, %4 : vector<16x32xf32>
    %6 = arith.mulf %0, %5 : vector<16x32xf32>
    %c0_1 = arith.constant 0 : index
    %c0_2 = arith.constant 0 : index
    %c0_3 = arith.constant 0 : index
    %c0_4 = arith.constant 0 : index
    %7 = vector.load %arg3[%c0_1, %c0_2, %c0_3, %c0_4] : memref<1x1x32x32xbf16, #tpu.memory_space<vmem>>, vector<1x1x32x32xbf16>
    %8 = vector.shape_cast %7 : vector<1x1x32x32xbf16> to vector<32x32xbf16>
    %9 = arith.truncf %6 : vector<16x32xf32> to vector<16x32xbf16>
    %cst_5 = arith.constant dense<0.000000e+00> : vector<16x32xf32>
    %10 = tpu.matmul %9, %8, %cst_5 {dimension_numbers = #tpu.dot_dimension_numbers<[1], [0], [0], [1], [0, 0, 1, 1], [], []>} : vector<16x32xbf16>, vector<32x32xbf16>, vector<16x32xf32> -> vector<16x32xf32>
    %c0_6 = arith.constant 0 : index
    %c0_7 = arith.constant 0 : index
    %c0_8 = arith.constant 0 : index
    %11 = vector.load %arg4[%c0_6, %c0_7, %c0_8] : memref<1x1x32xf32, #tpu.memory_space<vmem>>, vector<1x1x32xf32>
    %12 = vector.shape_cast %11 : vector<1x1x32xf32> to vector<1x32xf32>
    %13 = vector.broadcast %12 : vector<1x32xf32> to vector<16x32xf32>
    %14 = arith.mulf %10, %13 : vector<16x32xf32>
    %c0_9 = arith.constant 0 : index
    %c0_10 = arith.constant 0 : index
    %c0_11 = arith.constant 0 : index
    %15 = vector.load %arg5[%c0_9, %c0_10, %c0_11] : memref<1x1x32xf32, #tpu.memory_space<vmem>>, vector<1x1x32xf32>
    %16 = vector.shape_cast %15 : vector<1x1x32xf32> to vector<1x32xf32>
    %17 = vector.broadcast %16 : vector<1x32xf32> to vector<16x32xf32>
    %18 = arith.addf %14, %17 : vector<16x32xf32>
    %c0_12 = arith.constant 0 : index
    %c0_13 = arith.constant 0 : index
    %c0_14 = arith.constant 0 : index
    %19 = vector.load %arg6[%c0_12, %c0_13, %c0_14] : memref<1x16x32xf32, #tpu.memory_space<vmem>>, vector<1x16x32xf32>
    %20 = vector.shape_cast %19 : vector<1x16x32xf32> to vector<16x32xf32>
    %21 = vector.shape_cast %18 : vector<16x32xf32> to vector<1x16x32xf32>
    tpu.vector_store %arg6[%c0_12, %c0_13, %c0_14], %21 {strides = array<i32>} : memref<1x16x32xf32, #tpu.memory_space<vmem>>, vector<1x16x32xf32>,
    return
  }
  func.func @transform_0(%arg0: i32, %arg1: i32) -> (i32, i32) {
    %c0_i32 = arith.constant 0 : i32
    %c0_i32_0 = arith.constant 0 : i32
    %c0_i32_1 = arith.constant 0 : i32
    return %c0_i32, %c0_i32_0 : i32, i32
  }
  func.func @transform_1(%arg0: i32, %arg1: i32) -> (i32, i32, i32, i32) {
    %c0_i32 = arith.constant 0 : i32
    %c0_i32_0 = arith.constant 0 : i32
    %c0_i32_1 = arith.constant 0 : i32
    return %arg0, %arg1, %c0_i32, %c0_i32_0 : i32, i32, i32, i32
  }
  func.func @transform_2(%arg0: i32, %arg1: i32) -> (i32, i32, i32) {
    %c0_i32 = arith.constant 0 : i32
    %c0_i32_0 = arith.constant 0 : i32
    return %arg0, %c0_i32, %arg1 : i32, i32, i32
  }
  func.func @transform_3(%arg0: i32, %arg1: i32) -> (i32, i32, i32) {
    %c0_i32 = arith.constant 0 : i32
    %c0_i32_0 = arith.constant 0 : i32
    return %arg0, %c0_i32, %arg1 : i32, i32, i32
  }
  func.func @transform_4(%arg0: i32, %arg1: i32) -> (i32, i32, i32) {
    %c0_i32 = arith.constant 0 : i32
    %c0_i32_0 = arith.constant 0 : i32
    return %arg0, %c0_i32, %arg1 : i32, i32, i32
  }
}

</mosaic_0001>

<llo_original>
// kernel: tpu_custom_call.1
$region0: #{tpu_custom_call.1}
  #allocation0 [shape = 'u32[]', space=smem, size = 0x4, offset = 0x4, fixed_abs, tag = 'smem constant byte address 0x4 - core index']
  #allocation1 [shape = 'u32[144,128]{1,0:T(1,128)}', space=vmem, size = 0x12000, scoped, tag = 'internal scratch']
  %s0 = inlined_call_operand.hbm [shape: f32[16,32], index: 0, kind: input, shape index: {}]
  %s1 = inlined_call_operand.hbm [shape: bf16[6,1,32,32], index: 1, kind: input, shape index: {}]
  %s2 = inlined_call_operand.vmem [shape: f32[6,1,32], index: 2, kind: input, shape index: {}]
  %s3 = inlined_call_operand.hbm [shape: f32[6,1,32], index: 3, kind: input, shape index: {}]
  %s4 = inlined_call_operand.hbm [shape: f32[6,16,32], index: 4, kind: output, shape index: {}]
  %s5 = sld [smem:[#allocation0]]
  $region61: #{tpu_custom_call.1} parent=0
    _
  %s7 = ssub.s32 1, %s5
  %s8 = scalar_select 0, %s7, %s5
  $region1: #{tpu_custom_call.1} parent=0
    #allocation2 [shape = 'u8[8192]{0}', space=vmem, size = 0x2000, scoped, tag = 'input window, operand 0, single buffered']
    #allocation3 [shape = 's32[2]{0}', space=sflag, size = 0x8, scoped, tag = 'scoped memory for tpu_custom_call.1']
    #allocation4 [shape = 's32[2]{0}', space=sflag, size = 0x8, scoped, tag = 'scoped memory for tpu_custom_call.1']
    #allocation5 [shape = 'u8[16384]{0}', space=vmem, size = 0x4000, scoped, tag = 'input window, operand 1']
    #allocation6 [shape = 's32[2]{0}', space=sflag, size = 0x8, scoped, tag = 'scoped memory for tpu_custom_call.1']
    #allocation7 [shape = 'u8[1024]{0}', space=vmem, size = 0x400, scoped, tag = 'input window, operand 3']
    #allocation8 [shape = 'u8[16384]{0}', space=vmem, size = 0x4000, scoped, tag = 'output window, operand 0']
    %9 = vsyncpa [#allocation3], 0
    %10 = vsyncpa [#allocation6], 0
    %s11 = scalar_lea.sflag [#allocation6], 1
    %12 = vsyncpa %s11, 0
    %13 = vsyncpa [#allocation4], 0
    %s14 = scalar_lea.sflag [#allocation4], 1
    %15 = vsyncpa %s14, 0
    loop: start=0, step=1, limit=8
    $region2: #{tpu_custom_call.1} parent=1 // loop_pre_header
      _
    $region3: #{tpu_custom_call.1} parent=1 // loop_header
      %s17 = sphi 0, %s21
      %p18 = scmp.ge.s32.totalorder %s17, 8
      %s24 = sphi 0, %s36
      %s25 = sphi 0, %s32
      %s26 = sphi 0, %s24
      %s27 = sphi 0, %s25
      %s28 = sphi 0, %s26
      %s29 = sphi 0, %s27
      %s37 = sphi 0, %s37
      %s39 = sphi 0, %s37
      %s40 = sphi 0, %s39
      %s54 = sphi 0, %s40
      %s62 = sphi 0, %s64
      %s65 = sphi 0, %s62
      %s66 = sphi 0, %s65
      %s82 = sphi 0, %s66
      %s90 = sphi 0, %s92
      %s93 = sphi 0, %s90
      %s94 = sphi 0, %s93
      %s110 = sphi 0, %s94
      %s118 = sphi 0, %s120
      %s121 = sphi 0, %s118
      %s122 = sphi 0, %s121
      %s138 = sphi 0, %s122
      %s146 = sphi 0, %s148
      %s149 = sphi 0, %s146
      %s150 = sphi 0, %s149
      %s166 = sphi 0, %s150
    $region4: #{tpu_custom_call.1} parent=1 // loop_header_branch
      %20 = sbr.rel (%p18) target = $region8
    $region5: #{tpu_custom_call.1} parent=1 // loop_body
      %s22 = ssub.s32 %s17, 1
      %s23 = ssub.s32 %s17, 2
      %s30 = sadd.s32 1, %s25
      %p31 = scmp.ge.s32.totalorder %s30, 1
      %s32 = scalar_select %p31, 0, %s30
      %s33 = sadd.s32 1, %s24
      %s34 = scalar_select %p31, %s33, %s24
      %p35 = scmp.ge.s32.totalorder %s34, 6
      %s36 = scalar_select %p35, 0, %s34
      %s38 = sadd.s32 %s37, 1
      %p41 = scmp.eq.s32.totalorder %s17, 5
      %p42 = scmp.ne.s32.totalorder %s37, %s39
      %p43 = scmp.eq.s32.totalorder %s17, 0
      %p44 = por %p42, %p43
      %p45 = scmp.ne.s32.totalorder %s37, %s39
      %p46 = scmp.eq.s32.totalorder %s22, 5
      %p47 = por %p45, %p46
      %p48 = scmp.ne.s32.totalorder %s39, %s40
      %p49 = scmp.eq.s32.totalorder %s22, 0
      %p50 = por %p48, %p49
      %p51 = scmp.ne.s32.totalorder %s39, %s40
      %p52 = scmp.eq.s32.totalorder %s23, 5
      %p53 = por %p51, %p52
      %p55 = scmp.ne.s32.totalorder %s40, %s54
      %p56 = scmp.eq.s32.totalorder %s23, 0
      %p57 = por %p55, %p56
      %s58 = ssub.s32 %s24, %s36
      %s59 = ssub.s32 %s25, %s32
      %s60 = sor.u32 %s58, %s59
      %p61 = scmp.eq.s32.totalorder %s60, 0
      %s63 = sadd.s32 %s62, 1
      %s64 = scalar_select %p61, %s62, %s63
      %p67 = pneg %p61
      %p68 = scmp.eq.s32.totalorder %s17, 5
      %p69 = por %p67, %p68
      %p70 = scmp.ne.s32.totalorder %s62, %s65
      %p71 = scmp.eq.s32.totalorder %s17, 0
      %p72 = por %p70, %p71
      %p73 = scmp.ne.s32.totalorder %s62, %s65
      %p74 = scmp.eq.s32.totalorder %s22, 5
      %p75 = por %p73, %p74
      %p76 = scmp.ne.s32.totalorder %s65, %s66
      %p77 = scmp.eq.s32.totalorder %s22, 0
      %p78 = por %p76, %p77
      %p79 = scmp.ne.s32.totalorder %s65, %s66
      %p80 = scmp.eq.s32.totalorder %s23, 5
      %p81 = por %p79, %p80
      %p83 = scmp.ne.s32.totalorder %s66, %s82
      %p84 = scmp.eq.s32.totalorder %s23, 0
      %p85 = por %p83, %p84
      %s86 = ssub.s32 %s24, %s36
      %s87 = ssub.s32 %s25, %s32
      %s88 = sor.u32 %s86, %s87
      %p89 = scmp.eq.s32.totalorder %s88, 0
      %s91 = sadd.s32 %s90, 1
      %s92 = scalar_select %p89, %s90, %s91
      %p95 = pneg %p89
      %p96 = scmp.eq.s32.totalorder %s17, 5
      %p97 = por %p95, %p96
      %p98 = scmp.ne.s32.totalorder %s90, %s93
      %p99 = scmp.eq.s32.totalorder %s17, 0
      %p100 = por %p98, %p99
      %p101 = scmp.ne.s32.totalorder %s90, %s93
      %p102 = scmp.eq.s32.totalorder %s22, 5
      %p103 = por %p101, %p102
      %p104 = scmp.ne.s32.totalorder %s93, %s94
      %p105 = scmp.eq.s32.totalorder %s22, 0
      %p106 = por %p104, %p105
      %p107 = scmp.ne.s32.totalorder %s93, %s94
      %p108 = scmp.eq.s32.totalorder %s23, 5
      %p109 = por %p107, %p108
      %p111 = scmp.ne.s32.totalorder %s94, %s110
      %p112 = scmp.eq.s32.totalorder %s23, 0
      %p113 = por %p111, %p112
      %s114 = ssub.s32 %s24, %s36
      %s115 = ssub.s32 %s25, %s32
      %s116 = sor.u32 %s114, %s115
      %p117 = scmp.eq.s32.totalorder %s116, 0
      %s119 = sadd.s32 %s118, 1
      %s120 = scalar_select %p117, %s118, %s119
      %p123 = pneg %p117
      %p124 = scmp.eq.s32.totalorder %s17, 5
      %p125 = por %p123, %p124
      %p126 = scmp.ne.s32.totalorder %s118, %s121
      %p127 = scmp.eq.s32.totalorder %s17, 0
      %p128 = por %p126, %p127
      %p129 = scmp.ne.s32.totalorder %s118, %s121
      %p130 = scmp.eq.s32.totalorder %s22, 5
      %p131 = por %p129, %p130
      %p132 = scmp.ne.s32.totalorder %s121, %s122
      %p133 = scmp.eq.s32.totalorder %s22, 0
      %p134 = por %p132, %p133
      %p135 = scmp.ne.s32.totalorder %s121, %s122
      %p136 = scmp.eq.s32.totalorder %s23, 5
      %p137 = por %p135, %p136
      %p139 = scmp.ne.s32.totalorder %s122, %s138
      %p140 = scmp.eq.s32.totalorder %s23, 0
      %p141 = por %p139, %p140
      %s142 = ssub.s32 %s24, %s36
      %s143 = ssub.s32 %s25, %s32
      %s144 = sor.u32 %s142, %s143
      %p145 = scmp.eq.s32.totalorder %s144, 0
      %s147 = sadd.s32 %s146, 1
      %s148 = scalar_select %p145, %s146, %s147
      %p151 = pneg %p145
      %p152 = scmp.eq.s32.totalorder %s17, 5
      %p153 = por %p151, %p152
      %p154 = scmp.ne.s32.totalorder %s146, %s149
      %p155 = scmp.eq.s32.totalorder %s17, 0
      %p156 = por %p154, %p155
      %p157 = scmp.ne.s32.totalorder %s146, %s149
      %p158 = scmp.eq.s32.totalorder %s22, 5
      %p159 = por %p157, %p158
      %p160 = scmp.ne.s32.totalorder %s149, %s150
      %p161 = scmp.eq.s32.totalorder %s22, 0
      %p162 = por %p160, %p161
      %p163 = scmp.ne.s32.totalorder %s149, %s150
      %p164 = scmp.eq.s32.totalorder %s23, 5
      %p165 = por %p163, %p164
      %p167 = scmp.ne.s32.totalorder %s150, %s166
      %p168 = scmp.eq.s32.totalorder %s23, 0
      %p169 = por %p167, %p168
      %p170 = scmp.le.s32.totalorder 1, %s17
      %p171 = scmp.lt.s32.totalorder %s17, 7
      %p172 = pnand %p170, %p171
      %p173 = pneg %p172
      // Predicated region
      $region9: #{tpu_custom_call.1} parent=5 // pred_check
        _
      $region10: #{tpu_custom_call.1} parent=5 // pred_check_branch
        %175 = sbr.rel (%p172) target = $region12
      $region11: #{tpu_custom_call.1} parent=5 // pred_region
        %s176 = ssub.s32 %s17, 1
        // Predicated region
        $region13: #{tpu_custom_call.1} parent=11 // pred_check
          %p177 = pneg %p50
        $region14: #{tpu_custom_call.1} parent=11 // pred_check_branch
          %179 = sbr.rel (%p177) target = $region16
        $region15: #{tpu_custom_call.1} parent=11 // pred_region
          %s181 = ssub.s32 256, 256
          %182 = vsyncadd [#allocation3], %s181
          %s183 = sshll.u32 [#allocation2], 4
          %s184 = int_to_ptr.vmem [resolvable:$true] %s183
          %189 = dma.hbm_to_vmem [thread:$0]  %s0, 256, %s184, [#allocation3], 128, 128, 8
        $region16: #{tpu_custom_call.1} parent=11 // pred_fallthru
          _
      $region12: #{tpu_custom_call.1} parent=5 // pred_fallthru
        _
      %p190 = scmp.lt.s32.totalorder %s17, 6
      // Predicated region
      $region17: #{tpu_custom_call.1} parent=5 // pred_check
        %p191 = pneg %p190
      $region18: #{tpu_custom_call.1} parent=5 // pred_check_branch
        %193 = sbr.rel (%p191) target = $region20
      $region19: #{tpu_custom_call.1} parent=5 // pred_region
        // Predicated region
        $region21: #{tpu_custom_call.1} parent=19 // pred_check
          %p194 = pneg %p72
        $region22: #{tpu_custom_call.1} parent=19 // pred_check_branch
          %196 = sbr.rel (%p194) target = $region24
        $region23: #{tpu_custom_call.1} parent=19 // pred_region
          %s197 = sand.u32 %s17, 1
          %s198 = scalar_lea.sflag [#allocation6], %s197
          %s199 = sand.u32 %s62, 1
          %s200 = smul.addr %s199, 16
          %s201 = scalar_lea.vmem [#allocation5], %s200
          %s203 = ssub.s32 256, 256
          %204 = vsyncadd %s198, %s203
          %s205 = smul.addr %s25, 4
          %s206 = smul.addr %s24, 4
          %s207 = sadd.s32 %s205, %s206
          %s208 = smul.addr %s207, 64
          %s209 = scalar_lea.hbm %s1, %s208
          %s210 = sshll.u32 %s201, 4
          %s211 = int_to_ptr.vmem [resolvable:$true] %s210
          %216 = dma.hbm_to_vmem [thread:$0]  %s209, 256, %s211, %s198, 64, 64, 4
        $region24: #{tpu_custom_call.1} parent=19 // pred_fallthru
          _
        // Predicated region
        $region25: #{tpu_custom_call.1} parent=19 // pred_check
          %p217 = pneg %p100
        $region26: #{tpu_custom_call.1} parent=19 // pred_check_branch
          %219 = sbr.rel (%p217) target = $region28
        $region27: #{tpu_custom_call.1} parent=19 // pred_region
          %p220 = scmp.lt.s32.totalorder %s24, 5
          %s221 = scalar_select %p220, %s24, 5
          %p222 = scmp.lt.s32.totalorder %s25, 0
          %s223 = scalar_select %p222, %s25, 0
          %s224 = sadd.s32 %s223, %s221
          %s225 = scalar_lea.vmem %s2, %s224
        $region28: #{tpu_custom_call.1} parent=19 // pred_fallthru
          _
        // Predicated region
        $region29: #{tpu_custom_call.1} parent=19 // pred_check
          %p226 = pneg %p128
        $region30: #{tpu_custom_call.1} parent=19 // pred_check_branch
          %228 = sbr.rel (%p226) target = $region32
        $region31: #{tpu_custom_call.1} parent=19 // pred_region
          %s229 = sand.u32 %s17, 1
          %s230 = scalar_lea.sflag [#allocation6], %s229
          %s231 = sand.u32 %s118, 1
          %s232 = scalar_lea.vmem [#allocation7], %s231
          %s234 = ssub.s32 16, 16
          %235 = vsyncadd %s230, %s234
          %s236 = sadd.s32 %s25, %s24
          %s237 = smul.addr %s236, 16
          %s238 = scalar_lea.hbm %s3, %s237
          %s240 = sshll.u32 %s232, 4
          %s241 = int_to_ptr.vmem [resolvable:$true] %s240
          %243 = dma.hbm_to_vmem [thread:$0]  %s238, 16, %s241, %s230
        $region32: #{tpu_custom_call.1} parent=19 // pred_fallthru
          _
      $region20: #{tpu_custom_call.1} parent=5 // pred_fallthru
        _
      %p244 = scmp.le.s32.totalorder 1, %s17
      %p245 = scmp.lt.s32.totalorder %s17, 7
      %p246 = pnand %p244, %p245
      %p247 = pneg %p246
      // Predicated region
      $region33: #{tpu_custom_call.1} parent=5 // pred_check
        _
      $region34: #{tpu_custom_call.1} parent=5 // pred_check_branch
        %249 = sbr.rel (%p246) target = $region36
      $region35: #{tpu_custom_call.1} parent=5 // pred_region
        %s250 = ssub.s32 %s17, 1
        // Predicated region
        $region37: #{tpu_custom_call.1} parent=35 // pred_check
          %p251 = pneg %p50
        $region38: #{tpu_custom_call.1} parent=35 // pred_check_branch
          %253 = sbr.rel (%p251) target = $region40
        $region39: #{tpu_custom_call.1} parent=35 // pred_region
          %254 = dma.done [#allocation3], 256
        $region40: #{tpu_custom_call.1} parent=35 // pred_fallthru
          _
        %s255 = sand.u32 %s22, 1
        %s256 = scalar_lea.sflag [#allocation6], %s255
        %s257 = sand.u32 %s65, 1
        %s258 = smul.addr %s257, 16
        %s259 = scalar_lea.vmem [#allocation5], %s258
        // Predicated region
        $region41: #{tpu_custom_call.1} parent=35 // pred_check
          %p260 = pneg %p78
        $region42: #{tpu_custom_call.1} parent=35 // pred_check_branch
          %262 = sbr.rel (%p260) target = $region44
        $region43: #{tpu_custom_call.1} parent=35 // pred_region
          %263 = dma.done %s256, 256
        $region44: #{tpu_custom_call.1} parent=35 // pred_fallthru
          _
        %s264 = sand.u32 %s22, 1
        %s265 = scalar_lea.sflag [#allocation6], %s264
        %s266 = sand.u32 %s121, 1
        %s267 = scalar_lea.vmem [#allocation7], %s266
        // Predicated region
        $region45: #{tpu_custom_call.1} parent=35 // pred_check
          %p268 = pneg %p134
        $region46: #{tpu_custom_call.1} parent=35 // pred_check_branch
          %270 = sbr.rel (%p268) target = $region48
        $region47: #{tpu_custom_call.1} parent=35 // pred_region
          %271 = dma.done %s265, 16
        $region48: #{tpu_custom_call.1} parent=35 // pred_fallthru
          _
        %p272 = pneg %p50
        %p273 = pneg %p47
        %s274 = sand.u32 %s22, 1
        %s275 = scalar_lea.sflag [#allocation6], %s274
        %s276 = sand.u32 %s65, 1
        %s277 = smul.addr %s276, 16
        %s278 = scalar_lea.vmem [#allocation5], %s277
        %p279 = pneg %p78
        %p280 = pneg %p75
        %p281 = scmp.lt.s32.totalorder %s26, 5
        %s282 = scalar_select %p281, %s26, 5
        %p283 = scmp.lt.s32.totalorder %s27, 0
        %s284 = scalar_select %p283, %s27, 0
        %s285 = sadd.s32 %s284, %s282
        %s286 = scalar_lea.vmem %s2, %s285
        %p287 = pneg %p106
        %p288 = pneg %p103
        %s289 = sand.u32 %s22, 1
        %s290 = scalar_lea.sflag [#allocation6], %s289
        %s291 = sand.u32 %s121, 1
        %s292 = scalar_lea.vmem [#allocation7], %s291
        %p293 = pneg %p134
        %p294 = pneg %p131
        %p295 = pneg %p162
        %p296 = pneg %p159
        %s297 = sand.u32 %s149, 1
        %s298 = scalar_lea.sflag [#allocation4], %s297
        %s299 = sand.u32 %s149, 1
        %s300 = smul.addr %s299, 16
        %s301 = scalar_lea.vmem [#allocation8], %s300
        %p302 = scmp.lt.s32.totalorder %s26, 5
        %s303 = scalar_select %p302, %s26, 5
        %p304 = scmp.lt.s32.totalorder %s27, 0
        %s305 = scalar_select %p304, %s27, 0
        %s306 = sadd.s32 %s305, %s303
        %s307 = scalar_lea.vmem %s2, %s306
        %v309 = vld [vmem:[#allocation2] sm:$0xff]
        %v310 = vld [vmem:[#allocation2 + $0x8] sm:$0xff]
        %v311 = vxor.u32 %v309, 2147483648
        %v312 = vxor.u32 %v310, 2147483648
        %v313 = vmul.f32 %v311, 1.442695
        %v314 = vpow.pop %v313
        %v315 = vmul.f32 %v312, 1.442695
        %v316 = vpow.pop %v315
        %v317 = vadd.f32 %v314, 1.0
        %v318 = vadd.f32 %v316, 1.0
        %v319 = vrcp.pop %v317
        %v320 = vmul.f32 1.0, %v319
        %v321 = vrcp.pop %v318
        %v322 = vmul.f32 1.0, %v321
        %v323 = vmul.f32 %v309, %v320
        %v324 = vmul.f32 %v310, %v322
        %v325 = vld [vmem:[%s259] sm:$0xf]
        %v326 = vld [vmem:[%s259 + $0x4] sm:$0xf]
        %v327 = vld [vmem:[%s259 + $0x8] sm:$0xf]
        %v328 = vld [vmem:[%s259 + $0xc] sm:$0xf]
        %v329 = vpack.c.bf16 %v324, %v323
        %v334 = vunpack.c.l.b16 %v325
        %v335 = vunpack.c.l.b16 %v326
        %v336 = vunpack.c.l.b16 %v327
        %v337 = vunpack.c.l.b16 %v328
        %v338 = vpack.c.b16 %v335, %v334
        %v339 = vpack.c.b16 %v337, %v336
        %vm342 = vcmask 261120
        %v344 = vsel %vm342, %v329, 0
        %346 = vmatprep.subr.bf16.mxu0 0
        %347 = vmatpush1.bf16.msra.mxu0 %v338
        %348 = vmatprep.subr.bf16.mxu0 0
        %349 = vmatpush1.bf16.msra.mxu0 %v339
        %350 = vmatprep.subr.bf16.mxu0 0
        %351 = vmatpush1.bf16.msra.mxu0 0
        %352 = vmatprep.subr.bf16.mxu0 0
        %353 = vmatpush1.bf16.msra.mxu0 0
        %354 = vmatprep.subr.bf16.mxu0 0
        %355 = vmatpush1.bf16.msra.mxu0 0
        %356 = vmatprep.subr.bf16.mxu0 0
        %357 = vmatpush1.bf16.msra.mxu0 0
        %358 = vmatprep.subr.bf16.mxu0 0
        %359 = vmatpush1.bf16.msra.mxu0 0
        %360 = vmatprep.subr.bf16.mxu0 0
        %361 = vmatpush1.bf16.msra.mxu0 0
        %362 = vmatprep.subr.bf16.mxu0 0
        %363 = vmatpush1.bf16.msra.mxu0 0
        %364 = vmatprep.subr.bf16.mxu0 0
        %365 = vmatpush1.bf16.msra.mxu0 0
        %366 = vmatprep.subr.bf16.mxu0 0
        %367 = vmatpush1.bf16.msra.mxu0 0
        %368 = vmatprep.subr.bf16.mxu0 0
        %369 = vmatpush1.bf16.msra.mxu0 0
        %370 = vmatprep.subr.bf16.mxu0 0
        %371 = vmatpush1.bf16.msra.mxu0 0
        %372 = vmatprep.subr.bf16.mxu0 0
        %373 = vmatpush1.bf16.msra.mxu0 0
        %374 = vmatprep.subr.bf16.mxu0 0
        %375 = vmatpush1.bf16.msra.mxu0 0
        %376 = vmatprep.subr.bf16.mxu0 0
        %377 = vmatpush1.bf16.msra.mxu0 0
        %378 = vmatprep.mubr.bf16.mxu0 0
        %379 = vmatmul.mubr.bf16.gmra.mrb[0].mxu0 %v344
        %v380 = vpop.f32.mrb[0].mxu0
        %v381 = vadd.f32 0.0, %v380
        %v382 = vpop.f32.mrb[0].mxu0
        %v383 = vpop.f32.mrb[0].mxu0
        %v384 = vadd.f32 0.0, %v383
        %v385 = vpop.f32.mrb[0].mxu0
        %386 = vdwg.mxu0
        %v387 = vld [vmem:[%s307] sm:$0x1]
        %v389 = vlaneseq
        %v390 = vshrl.u32 %v389, 7
        %v391 = vsub.s32 0, %v390
        %v392 = vrot.slane %v387, %v391
        %v394 = vmul.f32 %v381, %v392
        %v395 = vmul.f32 %v384, %v392
        %v396 = vld [vmem:[%s267] sm:$0x1]
        %v398 = vlaneseq
        %v399 = vshrl.u32 %v398, 7
        %v400 = vsub.s32 0, %v399
        %v401 = vrot.slane %v396, %v400
        %v403 = vadd.f32 %v394, %v401
        %v404 = vadd.f32 %v395, %v401
        %405 = vst.msk [vmem:[%s301] sm:$0xff] %vm342, %v403
        %406 = vst.msk [vmem:[%s301 + $0x8] sm:$0xff] %vm342, %v404
        %s407 = sand.u32 %s149, 1
        %s408 = scalar_lea.sflag [#allocation4], %s407
        %s409 = sand.u32 %s149, 1
        %s410 = smul.addr %s409, 16
        %s411 = scalar_lea.vmem [#allocation8], %s410
        // Predicated region
        $region49: #{tpu_custom_call.1} parent=35 // pred_check
          %p412 = pneg %p159
        $region50: #{tpu_custom_call.1} parent=35 // pred_check_branch
          %414 = sbr.rel (%p412) target = $region52
        $region51: #{tpu_custom_call.1} parent=35 // pred_region
          %s416 = ssub.s32 256, 256
          %417 = vsyncadd %s408, %s416
          %s418 = smul.addr %s26, 2
          %s419 = sadd.s32 %s27, %s418
          %s420 = smul.addr %s419, 128
          %s421 = scalar_lea.hbm %s4, %s420
          %s422 = sshll.u32 %s411, 4
          %s423 = int_to_ptr.vmem [resolvable:$true] %s422
          %428 = dma.vmem_to_hbm [thread:$0]  %s423, 256, %s421, %s408, 128, 128, 8
        $region52: #{tpu_custom_call.1} parent=35 // pred_fallthru
          _
      $region36: #{tpu_custom_call.1} parent=5 // pred_fallthru
        _
      %p429 = scmp.le.s32.totalorder 2, %s17
      // Predicated region
      $region53: #{tpu_custom_call.1} parent=5 // pred_check
        %p430 = pneg %p429
      $region54: #{tpu_custom_call.1} parent=5 // pred_check_branch
        %432 = sbr.rel (%p430) target = $region56
      $region55: #{tpu_custom_call.1} parent=5 // pred_region
        %s433 = ssub.s32 %s17, 2
        // Predicated region
        $region57: #{tpu_custom_call.1} parent=55 // pred_check
          %p434 = pneg %p165
        $region58: #{tpu_custom_call.1} parent=55 // pred_check_branch
          %436 = sbr.rel (%p434) target = $region60
        $region59: #{tpu_custom_call.1} parent=55 // pred_region
          %s437 = sand.u32 %s150, 1
          %s438 = scalar_lea.sflag [#allocation4], %s437
          %s439 = sand.u32 %s150, 1
          %s440 = smul.addr %s439, 16
          %s441 = scalar_lea.vmem [#allocation8], %s440
          %442 = dma.done %s438, 256
        $region60: #{tpu_custom_call.1} parent=55 // pred_fallthru
          _
      $region56: #{tpu_custom_call.1} parent=5 // pred_fallthru
        _
    $region6: #{tpu_custom_call.1} parent=1 // loop_footer
      %s21 = sadd.s32 1, %s17
    $region7: #{tpu_custom_call.1} parent=1 // loop_footer_branch
      %16 = sbr.rel target = $region3
    $region8: #{tpu_custom_call.1} parent=1 // loop_exit
      _
    %443 = vsyncpa [#allocation3], 1
    %s444 = scalar_lea.sflag [#allocation3], 1
    %445 = vsyncpa %s444, 1
    %446 = vsyncpa [#allocation6], 1
    %s447 = scalar_lea.sflag [#allocation6], 1
    %448 = vsyncpa %s447, 1
    %449 = vsyncpa [#allocation4], 1
    %s450 = scalar_lea.sflag [#allocation4], 1
    %451 = vsyncpa %s450, 1

</llo_original>
